<compile_context>
chip_gen: v5e
topology: v5e:2x2
jax: 0.10.0
libtpu: 0.0.40
codegen_flags: <defaults>
</compile_context>

<pallas_src>
import functools

import numpy as np
import jax
import jax.numpy as jnp
from jax import lax
from jax.experimental import pallas as pl
from jax.experimental.pallas import tpu as pltpu

HIDDEN_DIM = 64  # fixed in OSGDecoder.__init__


def _osg_decoder_kernel(feat_ref, w1_ref, b1_ref, w2_ref, b2_ref, out_ref, *,
                        force_sigmoid, n_planes):
    # feat_ref: (P, T, C)  native-layout feature tile (batch dim squeezed).
    # w1_ref:  (H, C)      FC1 weight, gain-scaled and pre-divided by P
    #                      (plane mean folded into the matmul).
    # b1_ref:  (H, 1)
    # w2_ref:  (O, H)
    # b2_ref:  (O, 1)
    # out_ref: (O, T)      lane-dense fused output: row 0 = raw sigma,
    #                      rows 1: = sigmoid(+rescale) rgb.
    dn = (((1,), (1,)), ((), ()))  # contract C:  (H, C) x (T, C) -> (H, T)
    w1 = w1_ref[...]
    h = lax.dot_general(w1, feat_ref[0], dn, preferred_element_type=jnp.float32)
    for p in range(1, n_planes):  # P is tiny (3); static unroll onto the MXU
        h = h + lax.dot_general(w1, feat_ref[p], dn,
                                preferred_element_type=jnp.float32)
    h = jax.nn.softplus(h + b1_ref[...])                                # (H, T)

    y = jnp.dot(w2_ref[...], h, preferred_element_type=jnp.float32) + b2_ref[...]  # (O, T)

    sig = jax.nn.sigmoid(y)
    if not force_sigmoid:
        sig = sig * (1.0 + 2.0 * 0.001) - 0.001
    row = lax.broadcasted_iota(jnp.int32, y.shape, 0)                   # sublane index
    out_ref[...] = jnp.where(row == 0, y, sig).astype(out_ref.dtype)


def _default_tile_and_vmem():
    """Per-generation defaults: (row_tile, vmem_limit_bytes)."""
    try:
        info = pltpu.get_tpu_info()
        vmem_cap = int(getattr(info, "vmem_capacity_bytes", 64 * 1024 * 1024))
    except Exception:
        vmem_cap = 64 * 1024 * 1024
    if vmem_cap >= 128 * 1024 * 1024:          # v5e / v6e: 128 MiB VMEM
        return 8192, 96 * 1024 * 1024
    return 4096, 48 * 1024 * 1024              # v7x: 64 MiB per TensorCore


def init_osg_decoder_params(key, n_features, decoder_output_dim, decoder_lr_mul=1.0):
    """Deterministic synthetic parameters matching FullyConnectedLayer.

    Returns torch-equivalent *effective* params (gains pre-applied):
      w1 (C, H), b1 (H,), w2 (H, O), b2 (O,)  so that  y = softplus(x@w1+b1)@w2+b2.
    """
    out_dim = 1 + decoder_output_dim
    k1, k2 = jax.random.split(key)
    # torch: weight = randn([out, in]) / lr_multiplier ; bias = full(0)
    w1_raw = jax.random.normal(k1, (HIDDEN_DIM, n_features), jnp.float32) / decoder_lr_mul
    b1_raw = jnp.zeros((HIDDEN_DIM,), jnp.float32)
    w2_raw = jax.random.normal(k2, (out_dim, HIDDEN_DIM), jnp.float32) / decoder_lr_mul
    b2_raw = jnp.zeros((out_dim,), jnp.float32)

    wg1 = decoder_lr_mul / np.sqrt(n_features)
    wg2 = decoder_lr_mul / np.sqrt(HIDDEN_DIM)
    bg = decoder_lr_mul

    w1 = (w1_raw * wg1).T                      # (C, H)
    b1 = b1_raw * bg                           # (H,)
    w2 = (w2_raw * wg2).T                      # (H, O)
    b2 = b2_raw * bg                           # (O,)
    return w1, b1, w2, b2


def osg_decoder_forward(sampled_features, params, ray_directions=None,
                        force_sigmoid=False, tile=None, vmem_limit_bytes=None):
    """sampled_features: (N, planes, M, C) float32. ray_directions unused (parity)."""
    del ray_directions  # unused by the PyTorch forward as well
    N, P, M, C = sampled_features.shape
    w1, b1, w2, b2 = params
    H = w1.shape[1]
    O = w2.shape[1]

    default_tile, default_vmem = _default_tile_and_vmem()
    if tile is None:
        tile = default_tile
    if vmem_limit_bytes is None:
        vmem_limit_bytes = default_vmem

    # Row tile sits on the output lane axis -> must be a multiple of 128, or
    # equal to the full M extent (then it is a legal full-dim block).
    if tile >= M:
        tile = M
    else:
        tile = max(128, (tile // 128) * 128)
    # Keep >= 2 grid steps when possible so v7x's two TensorCores share work.
    if N * pl.cdiv(M, tile) < 2 and M >= 256:
        tile = max(128, ((pl.cdiv(M, 2) + 127) // 128) * 128)
    n_tiles = pl.cdiv(M, tile)   # ragged last block -> OOB stores masked (no pad copy)

    # Fold the plane-mean into FC1 and transpose weights so the kernel carries
    # the pipeline lane-dense: features on sublanes, rows on lanes.
    w1_k = jnp.transpose(w1) * (1.0 / P)       # (H, C)
    b1_k = b1.reshape(H, 1)                    # (H, 1)
    w2_k = jnp.transpose(w2)                   # (O, H)
    b2_k = b2.reshape(O, 1)                    # (O, 1)

    out = pl.pallas_call(
        functools.partial(_osg_decoder_kernel,
                          force_sigmoid=force_sigmoid, n_planes=P),
        out_shape=jax.ShapeDtypeStruct((N, O, M), jnp.float32),
        grid=(N, n_tiles),
        in_specs=[
            # native-layout feature tile: (batch squeezed, P, tile, C)
            pl.BlockSpec((pl.Squeezed(), P, tile, C), lambda n, i: (n, 0, i, 0)),
            pl.BlockSpec((H, C), lambda n, i: (0, 0)),   # W1 (resident)
            pl.BlockSpec((H, 1), lambda n, i: (0, 0)),   # b1
            pl.BlockSpec((O, H), lambda n, i: (0, 0)),   # W2
            pl.BlockSpec((O, 1), lambda n, i: (0, 0)),   # b2
        ],
        out_specs=pl.BlockSpec((pl.Squeezed(), O, tile), lambda n, i: (n, 0, i)),
        compiler_params=pltpu.CompilerParams(
            dimension_semantics=("parallel", "parallel"),
            vmem_limit_bytes=vmem_limit_bytes,
        ),
    )(sampled_features, w1_k, b1_k, w2_k, b2_k)

    # (N, O, M) -> rgb / sigma splits; the transpose is tiny (O << C*P).
    return {
        "rgb": jnp.transpose(out[:, 1:, :], (0, 2, 1)),     # (N, M, O-1), sigmoid(+rescale)
        "sigma": jnp.transpose(out[:, 0:1, :], (0, 2, 1)),  # (N, M, 1), raw
    }


def _reference_forward(sampled_features, params, force_sigmoid=False):
    """Plain-JAX reference mirroring the PyTorch forward."""
    w1, b1, w2, b2 = params
    x = sampled_features.mean(axis=1)          # (N, M, C)
    N, M, C = x.shape
    x = x.reshape(N * M, C)
    h = jax.nn.softplus(x @ w1 + b1[None, :])
    y = h @ w2 + b2[None, :]
    rgb = jax.nn.sigmoid(y[:, 1:])
    if not force_sigmoid:
        rgb = rgb * (1.0 + 2.0 * 0.001) - 0.001
    return {
        "rgb": rgb.reshape(N, M, -1),
        "sigma": y[:, 0:1].reshape(N, M, 1),
    }


if __name__ == "__main__":
    key = jax.random.PRNGKey(0)
    k_feat, k_feat2, k_param = jax.random.split(key, 3)

    # Small shapes: batch N=2, tri-planes=3, M=256 sampled points, C=32 features.
    N, P, M, C = 2, 3, 256, 32
    decoder_output_dim = 3            # -> net output dim = 1 + 3
    decoder_lr_mul = 1.0

    sampled_features = jax.random.normal(k_feat, (N, P, M, C), jnp.float32)
    ray_directions = jnp.zeros((N, M, 3), jnp.float32)  # unused by forward, kept for parity

    params = init_osg_decoder_params(k_param, C, decoder_output_dim, decoder_lr_mul)

    # Main path.
    out = osg_decoder_forward(sampled_features, params, ray_directions,
                              force_sigmoid=False)
    jax.block_until_ready(out)
    ref = _reference_forward(sampled_features, params, force_sigmoid=False)
    np.testing.assert_allclose(np.asarray(out["rgb"]), np.asarray(ref["rgb"]),
                               rtol=1e-5, atol=1e-5)
    np.testing.assert_allclose(np.asarray(out["sigma"]), np.asarray(ref["sigma"]),
                               rtol=1e-5, atol=1e-5)
    assert out["rgb"].shape == (N, M, decoder_output_dim)
    assert out["sigma"].shape == (N, M, 1)

    # force_sigmoid path.
    out_fs = osg_decoder_forward(sampled_features, params, ray_directions,
                                 force_sigmoid=True)
    ref_fs = _reference_forward(sampled_features, params, force_sigmoid=True)
    np.testing.assert_allclose(np.asarray(out_fs["rgb"]), np.asarray(ref_fs["rgb"]),
                               rtol=1e-5, atol=1e-5)

    # Ragged M (not a multiple of the tile): exercises the masked OOB last block.
    M2 = 200
    feats2 = jax.random.normal(k_feat2, (1, P, M2, C), jnp.float32)
    out2 = osg_decoder_forward(feats2, params, force_sigmoid=False, tile=128)
    jax.block_until_ready(out2)
    ref2 = _reference_forward(feats2, params, force_sigmoid=False)
    np.testing.assert_allclose(np.asarray(out2["rgb"]), np.asarray(ref2["rgb"]),
                               rtol=1e-5, atol=1e-5)
    np.testing.assert_allclose(np.asarray(out2["sigma"]), np.asarray(ref2["sigma"]),
                               rtol=1e-5, atol=1e-5)

    print("KERNEL_OK")
</pallas_src>

<mosaic_0001>
module attributes {stable_mosaic.version = 11 : i64} {
  func.func @_osg_decoder_kernel(%arg0: i32, %arg1: i32, %arg2: memref<1x3x256x32xf32, #tpu.memory_space<vmem>>, %arg3: memref<64x32xf32, #tpu.memory_space<vmem>>, %arg4: memref<64x1xf32, #tpu.memory_space<vmem>>, %arg5: memref<4x64xf32, #tpu.memory_space<vmem>>, %arg6: memref<4x1xf32, #tpu.memory_space<vmem>>, %arg7: memref<1x4x256xf32, #tpu.memory_space<vmem>>) attributes {dimension_semantics = [#tpu.dimension_semantics<parallel>, #tpu.dimension_semantics<parallel>], iteration_bounds = array<i64: 2, 1>, scalar_prefetch = 0 : i64, scratch_operands = 0 : i64, tpu.core_type = #tpu.core_type<tc>, window_params = [{transform_indices = @transform_0, window_bounds = array<i64: 1, 3, 256, 32>}, {pipeline_mode = #tpu.pipeline_mode<synchronous>, transform_indices = @transform_1, window_bounds = array<i64: 64, 32>}, {pipeline_mode = #tpu.pipeline_mode<synchronous>, transform_indices = @transform_2, window_bounds = array<i64: 64, 1>}, {pipeline_mode = #tpu.pipeline_mode<synchronous>, transform_indices = @transform_3, window_bounds = array<i64: 4, 64>}, {pipeline_mode = #tpu.pipeline_mode<synchronous>, transform_indices = @transform_4, window_bounds = array<i64: 4, 1>}, {transform_indices = @transform_5, window_bounds = array<i64: 1, 4, 256>}]} {
    %c0 = arith.constant 0 : index
    %c0_0 = arith.constant 0 : index
    %0 = vector.load %arg3[%c0, %c0_0] : memref<64x32xf32, #tpu.memory_space<vmem>>, vector<64x32xf32>
    %c0_1 = arith.constant 0 : index
    %c0_2 = arith.constant 0 : index
    %c0_3 = arith.constant 0 : index
    %c0_4 = arith.constant 0 : index
    %1 = vector.load %arg2[%c0_1, %c0_2, %c0_3, %c0_4] : memref<1x3x256x32xf32, #tpu.memory_space<vmem>>, vector<1x1x256x32xf32>
    %2 = vector.shape_cast %1 : vector<1x1x256x32xf32> to vector<256x32xf32>
    %cst = arith.constant dense<0.000000e+00> : vector<64x256xf32>
    %3 = tpu.matmul %0, %2, %cst {dimension_numbers = #tpu.dot_dimension_numbers<[1], [1], [0], [0], [0, 0, 1, 0], [], []>} : vector<64x32xf32>, vector<256x32xf32>, vector<64x256xf32> -> vector<64x256xf32>
    %c0_5 = arith.constant 0 : index
    %c1 = arith.constant 1 : index
    %c0_6 = arith.constant 0 : index
    %c0_7 = arith.constant 0 : index
    %4 = vector.load %arg2[%c0_5, %c1, %c0_6, %c0_7] : memref<1x3x256x32xf32, #tpu.memory_space<vmem>>, vector<1x1x256x32xf32>
    %5 = vector.shape_cast %4 : vector<1x1x256x32xf32> to vector<256x32xf32>
    %cst_8 = arith.constant dense<0.000000e+00> : vector<64x256xf32>
    %6 = tpu.matmul %0, %5, %cst_8 {dimension_numbers = #tpu.dot_dimension_numbers<[1], [1], [0], [0], [0, 0, 1, 0], [], []>} : vector<64x32xf32>, vector<256x32xf32>, vector<64x256xf32> -> vector<64x256xf32>
    %7 = arith.addf %3, %6 : vector<64x256xf32>
    %c0_9 = arith.constant 0 : index
    %c2 = arith.constant 2 : index
    %c0_10 = arith.constant 0 : index
    %c0_11 = arith.constant 0 : index
    %8 = vector.load %arg2[%c0_9, %c2, %c0_10, %c0_11] : memref<1x3x256x32xf32, #tpu.memory_space<vmem>>, vector<1x1x256x32xf32>
    %9 = vector.shape_cast %8 : vector<1x1x256x32xf32> to vector<256x32xf32>
    %cst_12 = arith.constant dense<0.000000e+00> : vector<64x256xf32>
    %10 = tpu.matmul %0, %9, %cst_12 {dimension_numbers = #tpu.dot_dimension_numbers<[1], [1], [0], [0], [0, 0, 1, 0], [], []>} : vector<64x32xf32>, vector<256x32xf32>, vector<64x256xf32> -> vector<64x256xf32>
    %11 = arith.addf %7, %10 : vector<64x256xf32>
    %c0_13 = arith.constant 0 : index
    %c0_14 = arith.constant 0 : index
    %12 = vector.load %arg4[%c0_13, %c0_14] : memref<64x1xf32, #tpu.memory_space<vmem>>, vector<64x1xf32>
    %13 = vector.broadcast %12 : vector<64x1xf32> to vector<64x256xf32>
    %14 = arith.addf %11, %13 : vector<64x256xf32>
    %cst_15 = arith.constant 0.000000e+00 : f32
    %15 = vector.broadcast %cst_15 : f32 to vector<64x256xf32>
    %16 = arith.maximumf %14, %15 : vector<64x256xf32>
    %17 = vector.broadcast %cst_15 : f32 to vector<64x256xf32>
    %18 = arith.subf %14, %17 : vector<64x256xf32>
    %19 = arith.cmpf one, %18, %18 : vector<64x256xf32>
    %20 = vector.broadcast %cst_15 : f32 to vector<64x256xf32>
    %21 = arith.addf %14, %20 : vector<64x256xf32>
    %22 = math.absf %18 : vector<64x256xf32>
    %cst_16 = arith.constant 0.000000e+00 : f32
    %23 = vector.broadcast %cst_16 : f32 to vector<64x256xf32>
    %24 = arith.subf %23, %22 : vector<64x256xf32>
    %25 = math.exp %24 : vector<64x256xf32>
    %26 = math.log1p %25 : vector<64x256xf32>
    %27 = arith.addf %16, %26 : vector<64x256xf32>
    %28 = arith.select %19, %21, %27 : vector<64x256xi1>, vector<64x256xf32>
    %c0_17 = arith.constant 0 : index
    %c0_18 = arith.constant 0 : index
    %29 = vector.load %arg5[%c0_17, %c0_18] : memref<4x64xf32, #tpu.memory_space<vmem>>, vector<4x64xf32>
    %cst_19 = arith.constant dense<0.000000e+00> : vector<4x256xf32>
    %30 = tpu.matmul %29, %28, %cst_19 {dimension_numbers = #tpu.dot_dimension_numbers<[1], [0], [0], [1], [0, 0, 1, 1], [], []>} : vector<4x64xf32>, vector<64x256xf32>, vector<4x256xf32> -> vector<4x256xf32>
    %c0_20 = arith.constant 0 : index
    %c0_21 = arith.constant 0 : index
    %31 = vector.load %arg6[%c0_20, %c0_21] : memref<4x1xf32, #tpu.memory_space<vmem>>, vector<4x1xf32>
    %32 = vector.broadcast %31 : vector<4x1xf32> to vector<4x256xf32>
    %33 = arith.addf %30, %32 : vector<4x256xf32>
    %34 = arith.negf %33 : vector<4x256xf32>
    %35 = math.exp %34 : vector<4x256xf32>
    %cst_22 = arith.constant 1.000000e+00 : f32
    %36 = vector.broadcast %cst_22 : f32 to vector<4x256xf32>
    %37 = arith.addf %36, %35 : vector<4x256xf32>
    %38 = arith.divf %36, %37 : vector<4x256xf32>
    %cst_23 = arith.constant 1.002000e+00 : f32
    %39 = vector.broadcast %cst_23 : f32 to vector<4x256xf32>
    %40 = arith.mulf %38, %39 : vector<4x256xf32>
    %cst_24 = arith.constant 1.000000e-03 : f32
    %41 = vector.broadcast %cst_24 : f32 to vector<4x256xf32>
    %42 = arith.subf %40, %41 : vector<4x256xf32>
    %43 = tpu.iota {dimensions = array<i32: 0>} : vector<4x256xi32>
    %c0_i32 = arith.constant 0 : i32
    %44 = vector.broadcast %c0_i32 : i32 to vector<4x256xi32>
    %45 = arith.cmpi eq, %43, %44 : vector<4x256xi32>
    %46 = arith.select %45, %33, %42 : vector<4x256xi1>, vector<4x256xf32>
    %c0_25 = arith.constant 0 : index
    %c0_26 = arith.constant 0 : index
    %c0_27 = arith.constant 0 : index
    %47 = vector.load %arg7[%c0_25, %c0_26, %c0_27] : memref<1x4x256xf32, #tpu.memory_space<vmem>>, vector<1x4x256xf32>
    %48 = vector.shape_cast %47 : vector<1x4x256xf32> to vector<4x256xf32>
    %49 = vector.shape_cast %46 : vector<4x256xf32> to vector<1x4x256xf32>
    tpu.vector_store %arg7[%c0_25, %c0_26, %c0_27], %49 {strides = array<i32>} : memref<1x4x256xf32, #tpu.memory_space<vmem>>, vector<1x4x256xf32>,
    return
  }
  func.func @transform_0(%arg0: i32, %arg1: i32) -> (i32, i32, i32, i32) {
    %c0_i32 = arith.constant 0 : i32
    %c0_i32_0 = arith.constant 0 : i32
    %c0_i32_1 = arith.constant 0 : i32
    return %arg0, %c0_i32, %arg1, %c0_i32_0 : i32, i32, i32, i32
  }
  func.func @transform_1(%arg0: i32, %arg1: i32) -> (i32, i32) {
    %c0_i32 = arith.constant 0 : i32
    %c0_i32_0 = arith.constant 0 : i32
    %c0_i32_1 = arith.constant 0 : i32
    return %c0_i32, %c0_i32_0 : i32, i32
  }
  func.func @transform_2(%arg0: i32, %arg1: i32) -> (i32, i32) {
    %c0_i32 = arith.constant 0 : i32
    %c0_i32_0 = arith.constant 0 : i32
    %c0_i32_1 = arith.constant 0 : i32
    return %c0_i32, %c0_i32_0 : i32, i32
  }
  func.func @transform_3(%arg0: i32, %arg1: i32) -> (i32, i32) {
    %c0_i32 = arith.constant 0 : i32
    %c0_i32_0 = arith.constant 0 : i32
    %c0_i32_1 = arith.constant 0 : i32
    return %c0_i32, %c0_i32_0 : i32, i32
  }
  func.func @transform_4(%arg0: i32, %arg1: i32) -> (i32, i32) {
    %c0_i32 = arith.constant 0 : i32
    %c0_i32_0 = arith.constant 0 : i32
    %c0_i32_1 = arith.constant 0 : i32
    return %c0_i32, %c0_i32_0 : i32, i32
  }
  func.func @transform_5(%arg0: i32, %arg1: i32) -> (i32, i32, i32) {
    %c0_i32 = arith.constant 0 : i32
    %c0_i32_0 = arith.constant 0 : i32
    return %arg0, %c0_i32, %arg1 : i32, i32, i32
  }
}

</mosaic_0001>

<llo_original>
// kernel: tpu_custom_call.1
$region0: #{tpu_custom_call.1}
  #allocation0 [shape = 'u32[]', space=smem, size = 0x4, offset = 0x4, fixed_abs, tag = 'smem constant byte address 0x4 - core index']
  #allocation1 [shape = 'u32[72,128]{1,0:T(1,128)}', space=vmem, size = 0x9000, scoped, tag = 'internal scratch']
  %s0 = inlined_call_operand.vmem [shape: f32[2,3,256,32], index: 0, kind: input, shape index: {}]
  %s1 = inlined_call_operand.vmem [shape: f32[64,32], index: 1, kind: input, shape index: {}]
  %s2 = inlined_call_operand.vmem [shape: f32[64,1], index: 2, kind: input, shape index: {}]
  %s3 = inlined_call_operand.vmem [shape: f32[4,64], index: 3, kind: input, shape index: {}]
  %s4 = inlined_call_operand.vmem [shape: f32[4,1], index: 4, kind: input, shape index: {}]
  %s5 = inlined_call_operand.hbm [shape: f32[2,4,256], index: 5, kind: output, shape index: {}]
  %s6 = sld [smem:[#allocation0]]
  $region53: #{tpu_custom_call.1} parent=0
    _
  %s8 = ssub.s32 1, %s6
  %s9 = scalar_select 0, %s8, %s6
  $region1: #{tpu_custom_call.1} parent=0
    #allocation2 [shape = 'u8[8192]{0}', space=vmem, size = 0x2000, scoped, tag = 'output window, operand 0']
    #allocation3 [shape = 's32[2]{0}', space=sflag, size = 0x8, scoped, tag = 'scoped memory for tpu_custom_call.1']
    %10 = vsyncpa [#allocation3], 0
    %s11 = scalar_lea.sflag [#allocation3], 1
    %12 = vsyncpa %s11, 0
    loop: start=0, step=1, limit=4
    $region2: #{tpu_custom_call.1} parent=1 // loop_pre_header
      _
    $region3: #{tpu_custom_call.1} parent=1 // loop_header
      %s14 = sphi 0, %s18
      %p15 = scmp.ge.s32.totalorder %s14, 4
      %s21 = sphi 0, %s33
      %s22 = sphi 0, %s29
      %s23 = sphi 0, %s21
      %s24 = sphi 0, %s22
      %s25 = sphi 0, %s23
      %s26 = sphi 0, %s24
      %s38 = sphi 0, %s40
      %s41 = sphi 0, %s38
      %s42 = sphi 0, %s41
      %s58 = sphi 0, %s42
      %s62 = sphi 0, %s62
      %s64 = sphi 0, %s62
      %s65 = sphi 0, %s64
      %s79 = sphi 0, %s65
      %s83 = sphi 0, %s83
      %s85 = sphi 0, %s83
      %s86 = sphi 0, %s85
      %s100 = sphi 0, %s86
      %s104 = sphi 0, %s104
      %s106 = sphi 0, %s104
      %s107 = sphi 0, %s106
      %s121 = sphi 0, %s107
      %s125 = sphi 0, %s125
      %s127 = sphi 0, %s125
      %s128 = sphi 0, %s127
      %s142 = sphi 0, %s128
      %s150 = sphi 0, %s152
      %s153 = sphi 0, %s150
      %s154 = sphi 0, %s153
      %s170 = sphi 0, %s154
    $region4: #{tpu_custom_call.1} parent=1 // loop_header_branch
      %17 = sbr.rel (%p15) target = $region8
    $region5: #{tpu_custom_call.1} parent=1 // loop_body
      %s19 = ssub.s32 %s14, 1
      %s20 = ssub.s32 %s14, 2
      %s27 = sadd.s32 1, %s22
      %p28 = scmp.ge.s32.totalorder %s27, 1
      %s29 = scalar_select %p28, 0, %s27
      %s30 = sadd.s32 1, %s21
      %s31 = scalar_select %p28, %s30, %s21
      %p32 = scmp.ge.s32.totalorder %s31, 2
      %s33 = scalar_select %p32, 0, %s31
      %s34 = ssub.s32 %s21, %s33
      %s35 = ssub.s32 %s22, %s29
      %s36 = sor.u32 %s34, %s35
      %p37 = scmp.eq.s32.totalorder %s36, 0
      %s39 = sadd.s32 %s38, 1
      %s40 = scalar_select %p37, %s38, %s39
      %p43 = pneg %p37
      %p44 = scmp.eq.s32.totalorder %s14, 1
      %p45 = por %p43, %p44
      %p46 = scmp.ne.s32.totalorder %s38, %s41
      %p47 = scmp.eq.s32.totalorder %s14, 0
      %p48 = por %p46, %p47
      %p49 = scmp.ne.s32.totalorder %s38, %s41
      %p50 = scmp.eq.s32.totalorder %s19, 1
      %p51 = por %p49, %p50
      %p52 = scmp.ne.s32.totalorder %s41, %s42
      %p53 = scmp.eq.s32.totalorder %s19, 0
      %p54 = por %p52, %p53
      %p55 = scmp.ne.s32.totalorder %s41, %s42
      %p56 = scmp.eq.s32.totalorder %s20, 1
      %p57 = por %p55, %p56
      %p59 = scmp.ne.s32.totalorder %s42, %s58
      %p60 = scmp.eq.s32.totalorder %s20, 0
      %p61 = por %p59, %p60
      %s63 = sadd.s32 %s62, 1
      %p66 = scmp.eq.s32.totalorder %s14, 1
      %p67 = scmp.ne.s32.totalorder %s62, %s64
      %p68 = scmp.eq.s32.totalorder %s14, 0
      %p69 = por %p67, %p68
      %p70 = scmp.ne.s32.totalorder %s62, %s64
      %p71 = scmp.eq.s32.totalorder %s19, 1
      %p72 = por %p70, %p71
      %p73 = scmp.ne.s32.totalorder %s64, %s65
      %p74 = scmp.eq.s32.totalorder %s19, 0
      %p75 = por %p73, %p74
      %p76 = scmp.ne.s32.totalorder %s64, %s65
      %p77 = scmp.eq.s32.totalorder %s20, 1
      %p78 = por %p76, %p77
      %p80 = scmp.ne.s32.totalorder %s65, %s79
      %p81 = scmp.eq.s32.totalorder %s20, 0
      %p82 = por %p80, %p81
      %s84 = sadd.s32 %s83, 1
      %p87 = scmp.eq.s32.totalorder %s14, 1
      %p88 = scmp.ne.s32.totalorder %s83, %s85
      %p89 = scmp.eq.s32.totalorder %s14, 0
      %p90 = por %p88, %p89
      %p91 = scmp.ne.s32.totalorder %s83, %s85
      %p92 = scmp.eq.s32.totalorder %s19, 1
      %p93 = por %p91, %p92
      %p94 = scmp.ne.s32.totalorder %s85, %s86
      %p95 = scmp.eq.s32.totalorder %s19, 0
      %p96 = por %p94, %p95
      %p97 = scmp.ne.s32.totalorder %s85, %s86
      %p98 = scmp.eq.s32.totalorder %s20, 1
      %p99 = por %p97, %p98
      %p101 = scmp.ne.s32.totalorder %s86, %s100
      %p102 = scmp.eq.s32.totalorder %s20, 0
      %p103 = por %p101, %p102
      %s105 = sadd.s32 %s104, 1
      %p108 = scmp.eq.s32.totalorder %s14, 1
      %p109 = scmp.ne.s32.totalorder %s104, %s106
      %p110 = scmp.eq.s32.totalorder %s14, 0
      %p111 = por %p109, %p110
      %p112 = scmp.ne.s32.totalorder %s104, %s106
      %p113 = scmp.eq.s32.totalorder %s19, 1
      %p114 = por %p112, %p113
      %p115 = scmp.ne.s32.totalorder %s106, %s107
      %p116 = scmp.eq.s32.totalorder %s19, 0
      %p117 = por %p115, %p116
      %p118 = scmp.ne.s32.totalorder %s106, %s107
      %p119 = scmp.eq.s32.totalorder %s20, 1
      %p120 = por %p118, %p119
      %p122 = scmp.ne.s32.totalorder %s107, %s121
      %p123 = scmp.eq.s32.totalorder %s20, 0
      %p124 = por %p122, %p123
      %s126 = sadd.s32 %s125, 1
      %p129 = scmp.eq.s32.totalorder %s14, 1
      %p130 = scmp.ne.s32.totalorder %s125, %s127
      %p131 = scmp.eq.s32.totalorder %s14, 0
      %p132 = por %p130, %p131
      %p133 = scmp.ne.s32.totalorder %s125, %s127
      %p134 = scmp.eq.s32.totalorder %s19, 1
      %p135 = por %p133, %p134
      %p136 = scmp.ne.s32.totalorder %s127, %s128
      %p137 = scmp.eq.s32.totalorder %s19, 0
      %p138 = por %p136, %p137
      %p139 = scmp.ne.s32.totalorder %s127, %s128
      %p140 = scmp.eq.s32.totalorder %s20, 1
      %p141 = por %p139, %p140
      %p143 = scmp.ne.s32.totalorder %s128, %s142
      %p144 = scmp.eq.s32.totalorder %s20, 0
      %p145 = por %p143, %p144
      %s146 = ssub.s32 %s21, %s33
      %s147 = ssub.s32 %s22, %s29
      %s148 = sor.u32 %s146, %s147
      %p149 = scmp.eq.s32.totalorder %s148, 0
      %s151 = sadd.s32 %s150, 1
      %s152 = scalar_select %p149, %s150, %s151
      %p155 = pneg %p149
      %p156 = scmp.eq.s32.totalorder %s14, 1
      %p157 = por %p155, %p156
      %p158 = scmp.ne.s32.totalorder %s150, %s153
      %p159 = scmp.eq.s32.totalorder %s14, 0
      %p160 = por %p158, %p159
      %p161 = scmp.ne.s32.totalorder %s150, %s153
      %p162 = scmp.eq.s32.totalorder %s19, 1
      %p163 = por %p161, %p162
      %p164 = scmp.ne.s32.totalorder %s153, %s154
      %p165 = scmp.eq.s32.totalorder %s19, 0
      %p166 = por %p164, %p165
      %p167 = scmp.ne.s32.totalorder %s153, %s154
      %p168 = scmp.eq.s32.totalorder %s20, 1
      %p169 = por %p167, %p168
      %p171 = scmp.ne.s32.totalorder %s154, %s170
      %p172 = scmp.eq.s32.totalorder %s20, 0
      %p173 = por %p171, %p172
      %p174 = scmp.le.s32.totalorder 1, %s14
      %p175 = scmp.lt.s32.totalorder %s14, 3
      %p176 = pnand %p174, %p175
      %p177 = pneg %p176
      // Predicated region
      $region9: #{tpu_custom_call.1} parent=5 // pred_check
        _
      $region10: #{tpu_custom_call.1} parent=5 // pred_check_branch
        %179 = sbr.rel (%p176) target = $region12
      $region11: #{tpu_custom_call.1} parent=5 // pred_region
        %s180 = ssub.s32 %s14, 1
        // Predicated region
        $region13: #{tpu_custom_call.1} parent=11 // pred_check
          %p181 = pneg %p75
        $region14: #{tpu_custom_call.1} parent=11 // pred_check_branch
          %183 = sbr.rel (%p181) target = $region16
        $region15: #{tpu_custom_call.1} parent=11 // pred_region
          _
        $region16: #{tpu_custom_call.1} parent=11 // pred_fallthru
          _
        // Predicated region
        $region17: #{tpu_custom_call.1} parent=11 // pred_check
          %p184 = pneg %p96
        $region18: #{tpu_custom_call.1} parent=11 // pred_check_branch
          %186 = sbr.rel (%p184) target = $region20
        $region19: #{tpu_custom_call.1} parent=11 // pred_region
          _
        $region20: #{tpu_custom_call.1} parent=11 // pred_fallthru
          _
        // Predicated region
        $region21: #{tpu_custom_call.1} parent=11 // pred_check
          %p187 = pneg %p117
        $region22: #{tpu_custom_call.1} parent=11 // pred_check_branch
          %189 = sbr.rel (%p187) target = $region24
        $region23: #{tpu_custom_call.1} parent=11 // pred_region
          _
        $region24: #{tpu_custom_call.1} parent=11 // pred_fallthru
          _
        // Predicated region
        $region25: #{tpu_custom_call.1} parent=11 // pred_check
          %p190 = pneg %p138
        $region26: #{tpu_custom_call.1} parent=11 // pred_check_branch
          %192 = sbr.rel (%p190) target = $region28
        $region27: #{tpu_custom_call.1} parent=11 // pred_region
          _
        $region28: #{tpu_custom_call.1} parent=11 // pred_fallthru
          _
      $region12: #{tpu_custom_call.1} parent=5 // pred_fallthru
        _
      %p193 = scmp.lt.s32.totalorder %s14, 2
      // Predicated region
      $region29: #{tpu_custom_call.1} parent=5 // pred_check
        %p194 = pneg %p193
      $region30: #{tpu_custom_call.1} parent=5 // pred_check_branch
        %196 = sbr.rel (%p194) target = $region32
      $region31: #{tpu_custom_call.1} parent=5 // pred_region
        // Predicated region
        $region33: #{tpu_custom_call.1} parent=31 // pred_check
          %p197 = pneg %p48
        $region34: #{tpu_custom_call.1} parent=31 // pred_check_branch
          %199 = sbr.rel (%p197) target = $region36
        $region35: #{tpu_custom_call.1} parent=31 // pred_region
          %s200 = smul.u32 32, %s22
          %p201 = scmp.lt.s32.totalorder %s21, 1
          %s202 = scalar_select %p201, %s21, 1
          %p203 = scmp.lt.s32.totalorder %s200, 31
          %s204 = scalar_select %p203, %s200, 31
          %s205 = smul.addr %s202, 96
          %s206 = sadd.s32 %s204, %s205
          %s207 = smul.addr %s206, 8
          %s208 = scalar_lea.vmem %s0, %s207
          %s209 = smul.u32 32, %s22
        $region36: #{tpu_custom_call.1} parent=31 // pred_fallthru
          _
      $region32: #{tpu_custom_call.1} parent=5 // pred_fallthru
        _
      %p210 = scmp.le.s32.totalorder 1, %s14
      %p211 = scmp.lt.s32.totalorder %s14, 3
      %p212 = pnand %p210, %p211
      %p213 = pneg %p212
      // Predicated region
      $region37: #{tpu_custom_call.1} parent=5 // pred_check
        _
      $region38: #{tpu_custom_call.1} parent=5 // pred_check_branch
        %215 = sbr.rel (%p212) target = $region40
      $region39: #{tpu_custom_call.1} parent=5 // pred_region
        %s216 = ssub.s32 %s14, 1
        %s217 = smul.u32 32, %s24
        %p218 = scmp.lt.s32.totalorder %s23, 1
        %s219 = scalar_select %p218, %s23, 1
        %p220 = scmp.lt.s32.totalorder %s217, 31
        %s221 = scalar_select %p220, %s217, 31
        %s222 = smul.addr %s219, 96
        %s223 = sadd.s32 %s221, %s222
        %s224 = smul.addr %s223, 8
        %s225 = scalar_lea.vmem %s0, %s224
        %p226 = pneg %p54
        %p227 = pneg %p51
        %p228 = pneg %p75
        %p229 = pneg %p72
        %p230 = pneg %p96
        %p231 = pneg %p93
        %p232 = pneg %p117
        %p233 = pneg %p114
        %p234 = pneg %p138
        %p235 = pneg %p135
        %p236 = pneg %p166
        %p237 = pneg %p163
        %s238 = sand.u32 %s153, 1
        %s239 = scalar_lea.sflag [#allocation3], %s238
        %s240 = sand.u32 %s153, 1
        %s241 = smul.addr %s240, 8
        %s242 = scalar_lea.vmem [#allocation2], %s241
        %s243 = smul.u32 32, %s24
        %p244 = scmp.lt.s32.totalorder %s23, 1
        %s245 = scalar_select %p244, %s23, 1
        %p246 = scmp.lt.s32.totalorder %s243, 31
        %s247 = scalar_select %p246, %s243, 31
        %s248 = smul.addr %s245, 96
        %s249 = sadd.s32 %s247, %s248
        %s250 = smul.addr %s249, 8
        %s251 = scalar_lea.vmem %s0, %s250
        %s252 = smul.u32 32, %s24
        %s253 = smul.u32 2, %s24
        %v254 = vld [vmem:[%s1] sm:$0xff]
        %v255 = vld [vmem:[%s1 + $0x8] sm:$0xff]
        %v256 = vld [vmem:[%s1 + $0x10] sm:$0xff]
        %v257 = vld [vmem:[%s1 + $0x18] sm:$0xff]
        %v258 = vld [vmem:[%s1 + $0x20] sm:$0xff]
        %v259 = vld [vmem:[%s1 + $0x28] sm:$0xff]
        %v260 = vld [vmem:[%s1 + $0x30] sm:$0xff]
        %v261 = vld [vmem:[%s1 + $0x38] sm:$0xff]
        %v262 = vld [vmem:[%s251] sm:$0xff]
        %v263 = vld [vmem:[%s251 + $0x8] sm:$0xff]
        %v264 = vld [vmem:[%s251 + $0x10] sm:$0xff]
        %v265 = vld [vmem:[%s251 + $0x18] sm:$0xff]
        %v266 = vld [vmem:[%s251 + $0x20] sm:$0xff]
        %v267 = vld [vmem:[%s251 + $0x28] sm:$0xff]
        %v268 = vld [vmem:[%s251 + $0x30] sm:$0xff]
        %v269 = vld [vmem:[%s251 + $0x38] sm:$0xff]
        %v270 = vld [vmem:[%s251 + $0x40] sm:$0xff]
        %v271 = vld [vmem:[%s251 + $0x48] sm:$0xff]
        %v272 = vld [vmem:[%s251 + $0x50] sm:$0xff]
        %v273 = vld [vmem:[%s251 + $0x58] sm:$0xff]
        %v274 = vld [vmem:[%s251 + $0x60] sm:$0xff]
        %v275 = vld [vmem:[%s251 + $0x68] sm:$0xff]
        %v276 = vld [vmem:[%s251 + $0x70] sm:$0xff]
        %v277 = vld [vmem:[%s251 + $0x78] sm:$0xff]
        %v278 = vld [vmem:[%s251 + $0x80] sm:$0xff]
        %v279 = vld [vmem:[%s251 + $0x88] sm:$0xff]
        %v280 = vld [vmem:[%s251 + $0x90] sm:$0xff]
        %v281 = vld [vmem:[%s251 + $0x98] sm:$0xff]
        %v282 = vld [vmem:[%s251 + $0xa0] sm:$0xff]
        %v283 = vld [vmem:[%s251 + $0xa8] sm:$0xff]
        %v284 = vld [vmem:[%s251 + $0xb0] sm:$0xff]
        %v285 = vld [vmem:[%s251 + $0xb8] sm:$0xff]
        %v286 = vld [vmem:[%s251 + $0xc0] sm:$0xff]
        %v287 = vld [vmem:[%s251 + $0xc8] sm:$0xff]
        %v288 = vld [vmem:[%s251 + $0xd0] sm:$0xff]
        %v289 = vld [vmem:[%s251 + $0xd8] sm:$0xff]
        %v290 = vld [vmem:[%s251 + $0xe0] sm:$0xff]
        %v291 = vld [vmem:[%s251 + $0xe8] sm:$0xff]
        %v292 = vld [vmem:[%s251 + $0xf0] sm:$0xff]
        %v293 = vld [vmem:[%s251 + $0xf8] sm:$0xff]
        %s294 = scalar_lea.vmem %s251, 256
        %v295 = vld [vmem:[%s294] sm:$0xff]
        %v296 = vld [vmem:[%s294 + $0x8] sm:$0xff]
        %v297 = vld [vmem:[%s294 + $0x10] sm:$0xff]
        %v298 = vld [vmem:[%s294 + $0x18] sm:$0xff]
        %v299 = vld [vmem:[%s294 + $0x20] sm:$0xff]
        %v300 = vld [vmem:[%s294 + $0x28] sm:$0xff]
        %v301 = vld [vmem:[%s294 + $0x30] sm:$0xff]
        %v302 = vld [vmem:[%s294 + $0x38] sm:$0xff]
        %v303 = vld [vmem:[%s294 + $0x40] sm:$0xff]
        %v304 = vld [vmem:[%s294 + $0x48] sm:$0xff]
        %v305 = vld [vmem:[%s294 + $0x50] sm:$0xff]
        %v306 = vld [vmem:[%s294 + $0x58] sm:$0xff]
        %v307 = vld [vmem:[%s294 + $0x60] sm:$0xff]
        %v308 = vld [vmem:[%s294 + $0x68] sm:$0xff]
        %v309 = vld [vmem:[%s294 + $0x70] sm:$0xff]
        %v310 = vld [vmem:[%s294 + $0x78] sm:$0xff]
        %v311 = vld [vmem:[%s294 + $0x80] sm:$0xff]
        %v312 = vld [vmem:[%s294 + $0x88] sm:$0xff]
        %v313 = vld [vmem:[%s294 + $0x90] sm:$0xff]
        %v314 = vld [vmem:[%s294 + $0x98] sm:$0xff]
        %v315 = vld [vmem:[%s294 + $0xa0] sm:$0xff]
        %v316 = vld [vmem:[%s294 + $0xa8] sm:$0xff]
        %v317 = vld [vmem:[%s294 + $0xb0] sm:$0xff]
        %v318 = vld [vmem:[%s294 + $0xb8] sm:$0xff]
        %v319 = vld [vmem:[%s294 + $0xc0] sm:$0xff]
        %v320 = vld [vmem:[%s294 + $0xc8] sm:$0xff]
        %v321 = vld [vmem:[%s294 + $0xd0] sm:$0xff]
        %v322 = vld [vmem:[%s294 + $0xd8] sm:$0xff]
        %v323 = vld [vmem:[%s294 + $0xe0] sm:$0xff]
        %v324 = vld [vmem:[%s294 + $0xe8] sm:$0xff]
        %v325 = vld [vmem:[%s294 + $0xf0] sm:$0xff]
        %v326 = vld [vmem:[%s294 + $0xf8] sm:$0xff]
        %vm327 = vcmask 261120
        %v329 = vsel %vm327, %v254, 0
        %v332 = vsel %vm327, %v255, 0
        %v335 = vsel %vm327, %v256, 0
        %v338 = vsel %vm327, %v257, 0
        %v341 = vsel %vm327, %v258, 0
        %v344 = vsel %vm327, %v259, 0
        %v347 = vsel %vm327, %v260, 0
        %v350 = vsel %vm327, %v261, 0
        %v353 = vsel %vm327, %v295, 0
        %v356 = vsel %vm327, %v296, 0
        %v359 = vsel %vm327, %v297, 0
        %v362 = vsel %vm327, %v298, 0
        %v365 = vsel %vm327, %v299, 0
        %v368 = vsel %vm327, %v300, 0
        %v371 = vsel %vm327, %v301, 0
        %v374 = vsel %vm327, %v302, 0
        %v377 = vsel %vm327, %v303, 0
        %v380 = vsel %vm327, %v304, 0
        %v383 = vsel %vm327, %v305, 0
        %v386 = vsel %vm327, %v306, 0
        %v389 = vsel %vm327, %v307, 0
        %v392 = vsel %vm327, %v308, 0
        %v395 = vsel %vm327, %v309, 0
        %v398 = vsel %vm327, %v310, 0
        %v401 = vsel %vm327, %v311, 0
        %v404 = vsel %vm327, %v312, 0
        %v407 = vsel %vm327, %v313, 0
        %v410 = vsel %vm327, %v314, 0
        %v413 = vsel %vm327, %v315, 0
        %v416 = vsel %vm327, %v316, 0
        %v419 = vsel %vm327, %v317, 0
        %v422 = vsel %vm327, %v318, 0
        %v425 = vsel %vm327, %v319, 0
        %v428 = vsel %vm327, %v320, 0
        %v431 = vsel %vm327, %v321, 0
        %v434 = vsel %vm327, %v322, 0
        %v437 = vsel %vm327, %v323, 0
        %v440 = vsel %vm327, %v324, 0
        %v443 = vsel %vm327, %v325, 0
        %v446 = vsel %vm327, %v326, 0
        %448 = vmatpush.xpose.msra.mxu0 %v398
        %449 = vmatpush.xpose.msra.mxu0 %v395
        %450 = vmatpush.xpose.msra.mxu0 %v392
        %451 = vmatpush.xpose.msra.mxu0 %v389
        %452 = vmatpush.xpose.msra.mxu0 %v386
        %453 = vmatpush.xpose.msra.mxu0 %v383
        %454 = vmatpush.xpose.msra.mxu0 %v380
        %455 = vmatpush.xpose.msra.mxu0 %v377
        %456 = vmatpush.xpose.msra.mxu0 %v374
        %457 = vmatpush.xpose.msra.mxu0 %v371
        %458 = vmatpush.xpose.msra.mxu0 %v368
        %459 = vmatpush.xpose.msra.mxu0 %v365
        %460 = vmatpush.xpose.msra.mxu0 %v362
        %461 = vmatpush.xpose.msra.mxu0 %v359
        %462 = vmatpush.xpose.msra.mxu0 %v356
        %463 = vmatpush.xpose.msra.mxu0 %v353
        %464 = vmatmul.f32.gmra.mxu0 %v329
        %v465 = vpop.f32.mrf.mxu0
        %v466 = vadd.f32 0.0, %v465
        %467 = vmatmul.f32.gmra.mxu0 %v332
        %v468 = vpop.f32.mrf.mxu0
        %v469 = vadd.f32 0.0, %v468
        %470 = vmatmul.f32.gmra.mxu0 %v335
        %v471 = vpop.f32.mrf.mxu0
        %v472 = vadd.f32 0.0, %v471
        %473 = vmatmul.f32.gmra.mxu0 %v338
        %v474 = vpop.f32.mrf.mxu0
        %v475 = vadd.f32 0.0, %v474
        %476 = vmatmul.f32.gmra.mxu0 %v341
        %v477 = vpop.f32.mrf.mxu0
        %v478 = vadd.f32 0.0, %v477
        %479 = vmatmul.f32.gmra.mxu0 %v344
        %v480 = vpop.f32.mrf.mxu0
        %v481 = vadd.f32 0.0, %v480
        %482 = vmatmul.f32.gmra.mxu0 %v347
        %v483 = vpop.f32.mrf.mxu0
        %v484 = vadd.f32 0.0, %v483
        %485 = vmatmul.f32.gmra.mxu0 %v350
        %v486 = vpop.f32.mrf.mxu0
        %v487 = vadd.f32 0.0, %v486
        %488 = vdwg.mxu0
        %489 = vmatpush.xpose.msra.mxu0 %v446
        %490 = vmatpush.xpose.msra.mxu0 %v443
        %491 = vmatpush.xpose.msra.mxu0 %v440
        %492 = vmatpush.xpose.msra.mxu0 %v437
        %493 = vmatpush.xpose.msra.mxu0 %v434
        %494 = vmatpush.xpose.msra.mxu0 %v431
        %495 = vmatpush.xpose.msra.mxu0 %v428
        %496 = vmatpush.xpose.msra.mxu0 %v425
        %497 = vmatpush.xpose.msra.mxu0 %v422
        %498 = vmatpush.xpose.msra.mxu0 %v419
        %499 = vmatpush.xpose.msra.mxu0 %v416
        %500 = vmatpush.xpose.msra.mxu0 %v413
        %501 = vmatpush.xpose.msra.mxu0 %v410
        %502 = vmatpush.xpose.msra.mxu0 %v407
        %503 = vmatpush.xpose.msra.mxu0 %v404
        %504 = vmatpush.xpose.msra.mxu0 %v401
        %505 = vmatmul.f32.gmra.mxu0 %v329
        %v506 = vpop.f32.mrf.mxu0
        %v507 = vadd.f32 0.0, %v506
        %508 = vmatmul.f32.gmra.mxu0 %v332
        %v509 = vpop.f32.mrf.mxu0
        %v510 = vadd.f32 0.0, %v509
        %511 = vmatmul.f32.gmra.mxu0 %v335
        %v512 = vpop.f32.mrf.mxu0
        %v513 = vadd.f32 0.0, %v512
        %514 = vmatmul.f32.gmra.mxu0 %v338
        %v515 = vpop.f32.mrf.mxu0
        %v516 = vadd.f32 0.0, %v515
        %517 = vmatmul.f32.gmra.mxu0 %v341
        %v518 = vpop.f32.mrf.mxu0
        %v519 = vadd.f32 0.0, %v518
        %520 = vmatmul.f32.gmra.mxu0 %v344
        %v521 = vpop.f32.mrf.mxu0
        %v522 = vadd.f32 0.0, %v521
        %523 = vmatmul.f32.gmra.mxu0 %v347
        %v524 = vpop.f32.mrf.mxu0
        %v525 = vadd.f32 0.0, %v524
        %526 = vmatmul.f32.gmra.mxu0 %v350
        %v527 = vpop.f32.mrf.mxu0
        %v528 = vadd.f32 0.0, %v527
        %529 = vdwg.mxu0
        %v531 = vsel %vm327, %v262, 0
        %v534 = vsel %vm327, %v263, 0
        %v537 = vsel %vm327, %v264, 0
        %v540 = vsel %vm327, %v265, 0
        %v543 = vsel %vm327, %v266, 0
        %v546 = vsel %vm327, %v267, 0
        %v549 = vsel %vm327, %v268, 0
        %v552 = vsel %vm327, %v269, 0
        %v555 = vsel %vm327, %v270, 0
        %v558 = vsel %vm327, %v271, 0
        %v561 = vsel %vm327, %v272, 0
        %v564 = vsel %vm327, %v273, 0
        %v567 = vsel %vm327, %v274, 0
        %v570 = vsel %vm327, %v275, 0
        %v573 = vsel %vm327, %v276, 0
        %v576 = vsel %vm327, %v277, 0
        %v579 = vsel %vm327, %v278, 0
        %v582 = vsel %vm327, %v279, 0
        %v585 = vsel %vm327, %v280, 0
        %v588 = vsel %vm327, %v281, 0
        %v591 = vsel %vm327, %v282, 0
        %v594 = vsel %vm327, %v283, 0
        %v597 = vsel %vm327, %v284, 0
        %v600 = vsel %vm327, %v285, 0
        %v603 = vsel %vm327, %v286, 0
        %v606 = vsel %vm327, %v287, 0
        %v609 = vsel %vm327, %v288, 0
        %v612 = vsel %vm327, %v289, 0
        %v615 = vsel %vm327, %v290, 0
        %v618 = vsel %vm327, %v291, 0
        %v621 = vsel %vm327, %v292, 0
        %v624 = vsel %vm327, %v293, 0
        %626 = vmatpush.xpose.msra.mxu0 %v576
        %627 = vmatpush.xpose.msra.mxu0 %v573
        %628 = vmatpush.xpose.msra.mxu0 %v570
        %629 = vmatpush.xpose.msra.mxu0 %v567
        %630 = vmatpush.xpose.msra.mxu0 %v564
        %631 = vmatpush.xpose.msra.mxu0 %v561
        %632 = vmatpush.xpose.msra.mxu0 %v558
        %633 = vmatpush.xpose.msra.mxu0 %v555
        %634 = vmatpush.xpose.msra.mxu0 %v552
        %635 = vmatpush.xpose.msra.mxu0 %v549
        %636 = vmatpush.xpose.msra.mxu0 %v546
        %637 = vmatpush.xpose.msra.mxu0 %v543
        %638 = vmatpush.xpose.msra.mxu0 %v540
        %639 = vmatpush.xpose.msra.mxu0 %v537
        %640 = vmatpush.xpose.msra.mxu0 %v534
        %641 = vmatpush.xpose.msra.mxu0 %v531
        %642 = vmatmul.f32.gmra.mxu0 %v329
        %v643 = vpop.f32.mrf.mxu0
        %v644 = vadd.f32 %v466, %v643
        %645 = vmatmul.f32.gmra.mxu0 %v332
        %v646 = vpop.f32.mrf.mxu0
        %v647 = vadd.f32 %v469, %v646
        %648 = vmatmul.f32.gmra.mxu0 %v335
        %v649 = vpop.f32.mrf.mxu0
        %v650 = vadd.f32 %v472, %v649
        %651 = vmatmul.f32.gmra.mxu0 %v338
        %v652 = vpop.f32.mrf.mxu0
        %v653 = vadd.f32 %v475, %v652
        %654 = vmatmul.f32.gmra.mxu0 %v341
        %v655 = vpop.f32.mrf.mxu0
        %v656 = vadd.f32 %v478, %v655
        %657 = vmatmul.f32.gmra.mxu0 %v344
        %v658 = vpop.f32.mrf.mxu0
        %v659 = vadd.f32 %v481, %v658
        %660 = vmatmul.f32.gmra.mxu0 %v347
        %v661 = vpop.f32.mrf.mxu0
        %v662 = vadd.f32 %v484, %v661
        %663 = vmatmul.f32.gmra.mxu0 %v350
        %v664 = vpop.f32.mrf.mxu0
        %v665 = vadd.f32 %v487, %v664
        %666 = vdwg.mxu0
        %667 = vmatpush.xpose.msra.mxu0 %v624
        %668 = vmatpush.xpose.msra.mxu0 %v621
        %669 = vmatpush.xpose.msra.mxu0 %v618
        %670 = vmatpush.xpose.msra.mxu0 %v615
        %671 = vmatpush.xpose.msra.mxu0 %v612
        %672 = vmatpush.xpose.msra.mxu0 %v609
        %673 = vmatpush.xpose.msra.mxu0 %v606
        %674 = vmatpush.xpose.msra.mxu0 %v603
        %675 = vmatpush.xpose.msra.mxu0 %v600
        %676 = vmatpush.xpose.msra.mxu0 %v597
        %677 = vmatpush.xpose.msra.mxu0 %v594
        %678 = vmatpush.xpose.msra.mxu0 %v591
        %679 = vmatpush.xpose.msra.mxu0 %v588
        %680 = vmatpush.xpose.msra.mxu0 %v585
        %681 = vmatpush.xpose.msra.mxu0 %v582
        %682 = vmatpush.xpose.msra.mxu0 %v579
        %683 = vmatmul.f32.gmra.mxu0 %v329
        %v684 = vpop.f32.mrf.mxu0
        %v685 = vadd.f32 %v507, %v684
        %686 = vmatmul.f32.gmra.mxu0 %v332
        %v687 = vpop.f32.mrf.mxu0
        %v688 = vadd.f32 %v510, %v687
        %689 = vmatmul.f32.gmra.mxu0 %v335
        %v690 = vpop.f32.mrf.mxu0
        %v691 = vadd.f32 %v513, %v690
        %692 = vmatmul.f32.gmra.mxu0 %v338
        %v693 = vpop.f32.mrf.mxu0
        %v694 = vadd.f32 %v516, %v693
        %695 = vmatmul.f32.gmra.mxu0 %v341
        %v696 = vpop.f32.mrf.mxu0
        %v697 = vadd.f32 %v519, %v696
        %698 = vmatmul.f32.gmra.mxu0 %v344
        %v699 = vpop.f32.mrf.mxu0
        %v700 = vadd.f32 %v522, %v699
        %701 = vmatmul.f32.gmra.mxu0 %v347
        %v702 = vpop.f32.mrf.mxu0
        %v703 = vadd.f32 %v525, %v702
        %704 = vmatmul.f32.gmra.mxu0 %v350
        %v705 = vpop.f32.mrf.mxu0
        %v706 = vadd.f32 %v528, %v705
        %707 = vdwg.mxu0
        %s708 = scalar_lea.vmem %s251, 512
        %v709 = vld [vmem:[%s708] sm:$0xff]
        %v710 = vld [vmem:[%s708 + $0x8] sm:$0xff]
        %v711 = vld [vmem:[%s708 + $0x10] sm:$0xff]
        %v712 = vld [vmem:[%s708 + $0x18] sm:$0xff]
        %v713 = vld [vmem:[%s708 + $0x20] sm:$0xff]
        %v714 = vld [vmem:[%s708 + $0x28] sm:$0xff]
        %v715 = vld [vmem:[%s708 + $0x30] sm:$0xff]
        %v716 = vld [vmem:[%s708 + $0x38] sm:$0xff]
        %v717 = vld [vmem:[%s708 + $0x40] sm:$0xff]
        %v718 = vld [vmem:[%s708 + $0x48] sm:$0xff]
        %v719 = vld [vmem:[%s708 + $0x50] sm:$0xff]
        %v720 = vld [vmem:[%s708 + $0x58] sm:$0xff]
        %v721 = vld [vmem:[%s708 + $0x60] sm:$0xff]
        %v722 = vld [vmem:[%s708 + $0x68] sm:$0xff]
        %v723 = vld [vmem:[%s708 + $0x70] sm:$0xff]
        %v724 = vld [vmem:[%s708 + $0x78] sm:$0xff]
        %v725 = vld [vmem:[%s708 + $0x80] sm:$0xff]
        %v726 = vld [vmem:[%s708 + $0x88] sm:$0xff]
        %v727 = vld [vmem:[%s708 + $0x90] sm:$0xff]
        %v728 = vld [vmem:[%s708 + $0x98] sm:$0xff]
        %v729 = vld [vmem:[%s708 + $0xa0] sm:$0xff]
        %v730 = vld [vmem:[%s708 + $0xa8] sm:$0xff]
        %v731 = vld [vmem:[%s708 + $0xb0] sm:$0xff]
        %v732 = vld [vmem:[%s708 + $0xb8] sm:$0xff]
        %v733 = vld [vmem:[%s708 + $0xc0] sm:$0xff]
        %v734 = vld [vmem:[%s708 + $0xc8] sm:$0xff]
        %v735 = vld [vmem:[%s708 + $0xd0] sm:$0xff]
        %v736 = vld [vmem:[%s708 + $0xd8] sm:$0xff]
        %v737 = vld [vmem:[%s708 + $0xe0] sm:$0xff]
        %v738 = vld [vmem:[%s708 + $0xe8] sm:$0xff]
        %v739 = vld [vmem:[%s708 + $0xf0] sm:$0xff]
        %v740 = vld [vmem:[%s708 + $0xf8] sm:$0xff]
        %v742 = vsel %vm327, %v709, 0
        %v745 = vsel %vm327, %v710, 0
        %v748 = vsel %vm327, %v711, 0
        %v751 = vsel %vm327, %v712, 0
        %v754 = vsel %vm327, %v713, 0
        %v757 = vsel %vm327, %v714, 0
        %v760 = vsel %vm327, %v715, 0
        %v763 = vsel %vm327, %v716, 0
        %v766 = vsel %vm327, %v717, 0
        %v769 = vsel %vm327, %v718, 0
        %v772 = vsel %vm327, %v719, 0
        %v775 = vsel %vm327, %v720, 0
        %v778 = vsel %vm327, %v721, 0
        %v781 = vsel %vm327, %v722, 0
        %v784 = vsel %vm327, %v723, 0
        %v787 = vsel %vm327, %v724, 0
        %v790 = vsel %vm327, %v725, 0
        %v793 = vsel %vm327, %v726, 0
        %v796 = vsel %vm327, %v727, 0
        %v799 = vsel %vm327, %v728, 0
        %v802 = vsel %vm327, %v729, 0
        %v805 = vsel %vm327, %v730, 0
        %v808 = vsel %vm327, %v731, 0
        %v811 = vsel %vm327, %v732, 0
        %v814 = vsel %vm327, %v733, 0
        %v817 = vsel %vm327, %v734, 0
        %v820 = vsel %vm327, %v735, 0
        %v823 = vsel %vm327, %v736, 0
        %v826 = vsel %vm327, %v737, 0
        %v829 = vsel %vm327, %v738, 0
        %v832 = vsel %vm327, %v739, 0
        %v835 = vsel %vm327, %v740, 0
        %837 = vmatpush.xpose.msra.mxu0 %v787
        %838 = vmatpush.xpose.msra.mxu0 %v784
        %839 = vmatpush.xpose.msra.mxu0 %v781
        %840 = vmatpush.xpose.msra.mxu0 %v778
        %841 = vmatpush.xpose.msra.mxu0 %v775
        %842 = vmatpush.xpose.msra.mxu0 %v772
        %843 = vmatpush.xpose.msra.mxu0 %v769
        %844 = vmatpush.xpose.msra.mxu0 %v766
        %845 = vmatpush.xpose.msra.mxu0 %v763
        %846 = vmatpush.xpose.msra.mxu0 %v760
        %847 = vmatpush.xpose.msra.mxu0 %v757
        %848 = vmatpush.xpose.msra.mxu0 %v754
        %849 = vmatpush.xpose.msra.mxu0 %v751
        %850 = vmatpush.xpose.msra.mxu0 %v748
        %851 = vmatpush.xpose.msra.mxu0 %v745
        %852 = vmatpush.xpose.msra.mxu0 %v742
        %853 = vmatmul.f32.gmra.mxu0 %v329
        %v854 = vpop.f32.mrf.mxu0
        %v855 = vadd.f32 0.0, %v854
        %856 = vmatmul.f32.gmra.mxu0 %v332
        %v857 = vpop.f32.mrf.mxu0
        %v858 = vadd.f32 0.0, %v857
        %859 = vmatmul.f32.gmra.mxu0 %v335
        %v860 = vpop.f32.mrf.mxu0
        %v861 = vadd.f32 0.0, %v860
        %862 = vmatmul.f32.gmra.mxu0 %v338
        %v863 = vpop.f32.mrf.mxu0
        %v864 = vadd.f32 0.0, %v863
        %865 = vmatmul.f32.gmra.mxu0 %v341
        %v866 = vpop.f32.mrf.mxu0
        %v867 = vadd.f32 0.0, %v866
        %868 = vmatmul.f32.gmra.mxu0 %v344
        %v869 = vpop.f32.mrf.mxu0
        %v870 = vadd.f32 0.0, %v869
        %871 = vmatmul.f32.gmra.mxu0 %v347
        %v872 = vpop.f32.mrf.mxu0
        %v873 = vadd.f32 0.0, %v872
        %874 = vmatmul.f32.gmra.mxu0 %v350
        %v875 = vpop.f32.mrf.mxu0
        %v876 = vadd.f32 0.0, %v875
        %877 = vdwg.mxu0
        %878 = vmatpush.xpose.msra.mxu0 %v835
        %879 = vmatpush.xpose.msra.mxu0 %v832
        %880 = vmatpush.xpose.msra.mxu0 %v829
        %881 = vmatpush.xpose.msra.mxu0 %v826
        %882 = vmatpush.xpose.msra.mxu0 %v823
        %883 = vmatpush.xpose.msra.mxu0 %v820
        %884 = vmatpush.xpose.msra.mxu0 %v817
        %885 = vmatpush.xpose.msra.mxu0 %v814
        %886 = vmatpush.xpose.msra.mxu0 %v811
        %887 = vmatpush.xpose.msra.mxu0 %v808
        %888 = vmatpush.xpose.msra.mxu0 %v805
        %889 = vmatpush.xpose.msra.mxu0 %v802
        %890 = vmatpush.xpose.msra.mxu0 %v799
        %891 = vmatpush.xpose.msra.mxu0 %v796
        %892 = vmatpush.xpose.msra.mxu0 %v793
        %893 = vmatpush.xpose.msra.mxu0 %v790
        %894 = vmatmul.f32.gmra.mxu0 %v329
        %v895 = vpop.f32.mrf.mxu0
        %v896 = vadd.f32 0.0, %v895
        %897 = vmatmul.f32.gmra.mxu0 %v332
        %v898 = vpop.f32.mrf.mxu0
        %v899 = vadd.f32 0.0, %v898
        %900 = vmatmul.f32.gmra.mxu0 %v335
        %v901 = vpop.f32.mrf.mxu0
        %v902 = vadd.f32 0.0, %v901
        %903 = vmatmul.f32.gmra.mxu0 %v338
        %v904 = vpop.f32.mrf.mxu0
        %v905 = vadd.f32 0.0, %v904
        %906 = vmatmul.f32.gmra.mxu0 %v341
        %v907 = vpop.f32.mrf.mxu0
        %v908 = vadd.f32 0.0, %v907
        %909 = vmatmul.f32.gmra.mxu0 %v344
        %v910 = vpop.f32.mrf.mxu0
        %v911 = vadd.f32 0.0, %v910
        %912 = vmatmul.f32.gmra.mxu0 %v347
        %v913 = vpop.f32.mrf.mxu0
        %v914 = vadd.f32 0.0, %v913
        %915 = vmatmul.f32.gmra.mxu0 %v350
        %v916 = vpop.f32.mrf.mxu0
        %v917 = vadd.f32 0.0, %v916
        %918 = vdwg.mxu0
        %v919 = vadd.f32 %v644, %v855
        %v920 = vadd.f32 %v685, %v896
        %v921 = vadd.f32 %v647, %v858
        %v922 = vadd.f32 %v688, %v899
        %v923 = vadd.f32 %v650, %v861
        %v924 = vadd.f32 %v691, %v902
        %v925 = vadd.f32 %v653, %v864
        %v926 = vadd.f32 %v694, %v905
        %v927 = vadd.f32 %v656, %v867
        %v928 = vadd.f32 %v697, %v908
        %v929 = vadd.f32 %v659, %v870
        %v930 = vadd.f32 %v700, %v911
        %v931 = vadd.f32 %v662, %v873
        %v932 = vadd.f32 %v703, %v914
        %v933 = vadd.f32 %v665, %v876
        %v934 = vadd.f32 %v706, %v917
        %v935 = vld [vmem:[%s2] sm:$0xff]
        %v936 = vld [vmem:[%s2 + $0x8] sm:$0xff]
        %v937 = vld [vmem:[%s2 + $0x10] sm:$0xff]
        %v938 = vld [vmem:[%s2 + $0x18] sm:$0xff]
        %v939 = vld [vmem:[%s2 + $0x20] sm:$0xff]
        %v940 = vld [vmem:[%s2 + $0x28] sm:$0xff]
        %v941 = vld [vmem:[%s2 + $0x30] sm:$0xff]
        %v942 = vld [vmem:[%s2 + $0x38] sm:$0xff]
        %944 = vset.pattern.permute.xlu0 0
        %945 = vperm.xlu0 %944, %v935
        %v946 = vpop.permute.xlu0 %945
        %949 = vset.pattern.permute.xlu0 0
        %950 = vperm.xlu0 %949, %v936
        %v951 = vpop.permute.xlu0 %950
        %954 = vset.pattern.permute.xlu0 0
        %955 = vperm.xlu0 %954, %v937
        %v956 = vpop.permute.xlu0 %955
        %959 = vset.pattern.permute.xlu0 0
        %960 = vperm.xlu0 %959, %v938
        %v961 = vpop.permute.xlu0 %960
        %964 = vset.pattern.permute.xlu0 0
        %965 = vperm.xlu0 %964, %v939
        %v966 = vpop.permute.xlu0 %965
        %969 = vset.pattern.permute.xlu0 0
        %970 = vperm.xlu0 %969, %v940
        %v971 = vpop.permute.xlu0 %970
        %974 = vset.pattern.permute.xlu0 0
        %975 = vperm.xlu0 %974, %v941
        %v976 = vpop.permute.xlu0 %975
        %979 = vset.pattern.permute.xlu0 0
        %980 = vperm.xlu0 %979, %v942
        %v981 = vpop.permute.xlu0 %980
        %v983 = vadd.f32 %v919, %v946
        %v984 = vadd.f32 %v920, %v946
        %v985 = vadd.f32 %v921, %v951
        %v986 = vadd.f32 %v922, %v951
        %v987 = vadd.f32 %v923, %v956
        %v988 = vadd.f32 %v924, %v956
        %v989 = vadd.f32 %v925, %v961
        %v990 = vadd.f32 %v926, %v961
        %v991 = vadd.f32 %v927, %v966
        %v992 = vadd.f32 %v928, %v966
        %v993 = vadd.f32 %v929, %v971
        %v994 = vadd.f32 %v930, %v971
        %v995 = vadd.f32 %v931, %v976
        %v996 = vadd.f32 %v932, %v976
        %v997 = vadd.f32 %v933, %v981
        %v998 = vadd.f32 %v934, %v981
        %v999 = vmax.f32 %v983, 0.0
        %v1000 = vmax.f32 %v984, 0.0
        %v1001 = vmax.f32 %v985, 0.0
        %v1002 = vmax.f32 %v986, 0.0
        %v1003 = vmax.f32 %v987, 0.0
        %v1004 = vmax.f32 %v988, 0.0
        %v1005 = vmax.f32 %v989, 0.0
        %v1006 = vmax.f32 %v990, 0.0
        %v1007 = vmax.f32 %v991, 0.0
        %v1008 = vmax.f32 %v992, 0.0
        %v1009 = vmax.f32 %v993, 0.0
        %v1010 = vmax.f32 %v994, 0.0
        %v1011 = vmax.f32 %v995, 0.0
        %v1012 = vmax.f32 %v996, 0.0
        %v1013 = vmax.f32 %v997, 0.0
        %v1014 = vmax.f32 %v998, 0.0
        %vm1015 = vcmp.ne.f32.partialorder %v983, %v983
        %vm1016 = vcmp.ne.f32.partialorder %v984, %v984
        %vm1017 = vcmp.ne.f32.partialorder %v985, %v985
        %vm1018 = vcmp.ne.f32.partialorder %v986, %v986
        %vm1019 = vcmp.ne.f32.partialorder %v987, %v987
        %vm1020 = vcmp.ne.f32.partialorder %v988, %v988
        %vm1021 = vcmp.ne.f32.partialorder %v989, %v989
        %vm1022 = vcmp.ne.f32.partialorder %v990, %v990
        %vm1023 = vcmp.ne.f32.partialorder %v991, %v991
        %vm1024 = vcmp.ne.f32.partialorder %v992, %v992
        %vm1025 = vcmp.ne.f32.partialorder %v993, %v993
        %vm1026 = vcmp.ne.f32.partialorder %v994, %v994
        %vm1027 = vcmp.ne.f32.partialorder %v995, %v995
        %vm1028 = vcmp.ne.f32.partialorder %v996, %v996
        %vm1029 = vcmp.ne.f32.partialorder %v997, %v997
        %vm1030 = vcmp.ne.f32.partialorder %v998, %v998
        %v1031 = vadd.f32 %v983, 0.0
        %v1032 = vadd.f32 %v984, 0.0
        %v1033 = vadd.f32 %v985, 0.0
        %v1034 = vadd.f32 %v986, 0.0
        %v1035 = vadd.f32 %v987, 0.0
        %v1036 = vadd.f32 %v988, 0.0
        %v1037 = vadd.f32 %v989, 0.0
        %v1038 = vadd.f32 %v990, 0.0
        %v1039 = vadd.f32 %v991, 0.0
        %v1040 = vadd.f32 %v992, 0.0
        %v1041 = vadd.f32 %v993, 0.0
        %v1042 = vadd.f32 %v994, 0.0
        %v1043 = vadd.f32 %v995, 0.0
        %v1044 = vadd.f32 %v996, 0.0
        %v1045 = vadd.f32 %v997, 0.0
        %v1046 = vadd.f32 %v998, 0.0
        %v1047 = vand.u32 2147483647, %v983
        %v1048 = vand.u32 2147483647, %v984
        %v1049 = vand.u32 2147483647, %v985
        %v1050 = vand.u32 2147483647, %v986
        %v1051 = vand.u32 2147483647, %v987
        %v1052 = vand.u32 2147483647, %v988
        %v1053 = vand.u32 2147483647, %v989
        %v1054 = vand.u32 2147483647, %v990
        %v1055 = vand.u32 2147483647, %v991
        %v1056 = vand.u32 2147483647, %v992
        %v1057 = vand.u32 2147483647, %v993
        %v1058 = vand.u32 2147483647, %v994
        %v1059 = vand.u32 2147483647, %v995
        %v1060 = vand.u32 2147483647, %v996
        %v1061 = vand.u32 2147483647, %v997
        %v1062 = vand.u32 2147483647, %v998
        %v1063 = vsub.f32 0.0, %v1047
        %v1064 = vsub.f32 0.0, %v1048
        %v1065 = vsub.f32 0.0, %v1049
        %v1066 = vsub.f32 0.0, %v1050
        %v1067 = vsub.f32 0.0, %v1051
        %v1068 = vsub.f32 0.0, %v1052
        %v1069 = vsub.f32 0.0, %v1053
        %v1070 = vsub.f32 0.0, %v1054
        %v1071 = vsub.f32 0.0, %v1055
        %v1072 = vsub.f32 0.0, %v1056
        %v1073 = vsub.f32 0.0, %v1057
        %v1074 = vsub.f32 0.0, %v1058
        %v1075 = vsub.f32 0.0, %v1059
        %v1076 = vsub.f32 0.0, %v1060
        %v1077 = vsub.f32 0.0, %v1061
        %v1078 = vsub.f32 0.0, %v1062
        %v1079 = vmul.f32 %v1063, 1.442695
        %v1080 = vpow.pop %v1079
        %v1081 = vmul.f32 %v1064, 1.442695
        %v1082 = vpow.pop %v1081
        %v1083 = vmul.f32 %v1065, 1.442695
        %v1084 = vpow.pop %v1083
        %v1085 = vmul.f32 %v1066, 1.442695
        %v1086 = vpow.pop %v1085
        %v1087 = vmul.f32 %v1067, 1.442695
        %v1088 = vpow.pop %v1087
        %v1089 = vmul.f32 %v1068, 1.442695
        %v1090 = vpow.pop %v1089
        %v1091 = vmul.f32 %v1069, 1.442695
        %v1092 = vpow.pop %v1091
        %v1093 = vmul.f32 %v1070, 1.442695
        %v1094 = vpow.pop %v1093
        %v1095 = vmul.f32 %v1071, 1.442695
        %v1096 = vpow.pop %v1095
        %v1097 = vmul.f32 %v1072, 1.442695
        %v1098 = vpow.pop %v1097
        %v1099 = vmul.f32 %v1073, 1.442695
        %v1100 = vpow.pop %v1099
        %v1101 = vmul.f32 %v1074, 1.442695
        %v1102 = vpow.pop %v1101
        %v1103 = vmul.f32 %v1075, 1.442695
        %v1104 = vpow.pop %v1103
        %v1105 = vmul.f32 %v1076, 1.442695
        %v1106 = vpow.pop %v1105
        %v1107 = vmul.f32 %v1077, 1.442695
        %v1108 = vpow.pop %v1107
        %v1109 = vmul.f32 %v1078, 1.442695
        %v1110 = vpow.pop %v1109
        %v1111 = vadd.f32 %v1080, 1.0
        %v1112 = vlog2.pop %v1111
        %v1113 = vmul.f32 %v1112, 0.6931472
        %v1114 = vmul.f32 -0.5, %v1080
        %v1115 = vadd.f32 %v1114, 1.0
        %v1116 = vmul.f32 %v1115, %v1080
        %v1117 = vand.u32 2147483647, %v1080
        %vm1118 = vcmp.lt.f32.partialorder %v1117, 0.0004427343
        %v1119 = vsel %vm1118, %v1116, %v1113
        %v1120 = vadd.f32 %v1082, 1.0
        %v1121 = vlog2.pop %v1120
        %v1122 = vmul.f32 %v1121, 0.6931472
        %v1123 = vmul.f32 -0.5, %v1082
        %v1124 = vadd.f32 %v1123, 1.0
        %v1125 = vmul.f32 %v1124, %v1082
        %v1126 = vand.u32 2147483647, %v1082
        %vm1127 = vcmp.lt.f32.partialorder %v1126, 0.0004427343
        %v1128 = vsel %vm1127, %v1125, %v1122
        %v1129 = vadd.f32 %v1084, 1.0
        %v1130 = vlog2.pop %v1129
        %v1131 = vmul.f32 %v1130, 0.6931472
        %v1132 = vmul.f32 -0.5, %v1084
        %v1133 = vadd.f32 %v1132, 1.0
        %v1134 = vmul.f32 %v1133, %v1084
        %v1135 = vand.u32 2147483647, %v1084
        %vm1136 = vcmp.lt.f32.partialorder %v1135, 0.0004427343
        %v1137 = vsel %vm1136, %v1134, %v1131
        %v1138 = vadd.f32 %v1086, 1.0
        %v1139 = vlog2.pop %v1138
        %v1140 = vmul.f32 %v1139, 0.6931472
        %v1141 = vmul.f32 -0.5, %v1086
        %v1142 = vadd.f32 %v1141, 1.0
        %v1143 = vmul.f32 %v1142, %v1086
        %v1144 = vand.u32 2147483647, %v1086
        %vm1145 = vcmp.lt.f32.partialorder %v1144, 0.0004427343
        %v1146 = vsel %vm1145, %v1143, %v1140
        %v1147 = vadd.f32 %v1088, 1.0
        %v1148 = vlog2.pop %v1147
        %v1149 = vmul.f32 %v1148, 0.6931472
        %v1150 = vmul.f32 -0.5, %v1088
        %v1151 = vadd.f32 %v1150, 1.0
        %v1152 = vmul.f32 %v1151, %v1088
        %v1153 = vand.u32 2147483647, %v1088
        %vm1154 = vcmp.lt.f32.partialorder %v1153, 0.0004427343
        %v1155 = vsel %vm1154, %v1152, %v1149
        %v1156 = vadd.f32 %v1090, 1.0
        %v1157 = vlog2.pop %v1156
        %v1158 = vmul.f32 %v1157, 0.6931472
        %v1159 = vmul.f32 -0.5, %v1090
        %v1160 = vadd.f32 %v1159, 1.0
        %v1161 = vmul.f32 %v1160, %v1090
        %v1162 = vand.u32 2147483647, %v1090
        %vm1163 = vcmp.lt.f32.partialorder %v1162, 0.0004427343
        %v1164 = vsel %vm1163, %v1161, %v1158
        %v1165 = vadd.f32 %v1092, 1.0
        %v1166 = vlog2.pop %v1165
        %v1167 = vmul.f32 %v1166, 0.6931472
        %v1168 = vmul.f32 -0.5, %v1092
        %v1169 = vadd.f32 %v1168, 1.0
        %v1170 = vmul.f32 %v1169, %v1092
        %v1171 = vand.u32 2147483647, %v1092
        %vm1172 = vcmp.lt.f32.partialorder %v1171, 0.0004427343
        %v1173 = vsel %vm1172, %v1170, %v1167
        %v1174 = vadd.f32 %v1094, 1.0
        %v1175 = vlog2.pop %v1174
        %v1176 = vmul.f32 %v1175, 0.6931472
        %v1177 = vmul.f32 -0.5, %v1094
        %v1178 = vadd.f32 %v1177, 1.0
        %v1179 = vmul.f32 %v1178, %v1094
        %v1180 = vand.u32 2147483647, %v1094
        %vm1181 = vcmp.lt.f32.partialorder %v1180, 0.0004427343
        %v1182 = vsel %vm1181, %v1179, %v1176
        %v1183 = vadd.f32 %v1096, 1.0
        %v1184 = vlog2.pop %v1183
        %v1185 = vmul.f32 %v1184, 0.6931472
        %v1186 = vmul.f32 -0.5, %v1096
        %v1187 = vadd.f32 %v1186, 1.0
        %v1188 = vmul.f32 %v1187, %v1096
        %v1189 = vand.u32 2147483647, %v1096
        %vm1190 = vcmp.lt.f32.partialorder %v1189, 0.0004427343
        %v1191 = vsel %vm1190, %v1188, %v1185
        %v1192 = vadd.f32 %v1098, 1.0
        %v1193 = vlog2.pop %v1192
        %v1194 = vmul.f32 %v1193, 0.6931472
        %v1195 = vmul.f32 -0.5, %v1098
        %v1196 = vadd.f32 %v1195, 1.0
        %v1197 = vmul.f32 %v1196, %v1098
        %v1198 = vand.u32 2147483647, %v1098
        %vm1199 = vcmp.lt.f32.partialorder %v1198, 0.0004427343
        %v1200 = vsel %vm1199, %v1197, %v1194
        %v1201 = vadd.f32 %v1100, 1.0
        %v1202 = vlog2.pop %v1201
        %v1203 = vmul.f32 %v1202, 0.6931472
        %v1204 = vmul.f32 -0.5, %v1100
        %v1205 = vadd.f32 %v1204, 1.0
        %v1206 = vmul.f32 %v1205, %v1100
        %v1207 = vand.u32 2147483647, %v1100
        %vm1208 = vcmp.lt.f32.partialorder %v1207, 0.0004427343
        %v1209 = vsel %vm1208, %v1206, %v1203
        %v1210 = vadd.f32 %v1102, 1.0
        %v1211 = vlog2.pop %v1210
        %v1212 = vmul.f32 %v1211, 0.6931472
        %v1213 = vmul.f32 -0.5, %v1102
        %v1214 = vadd.f32 %v1213, 1.0
        %v1215 = vmul.f32 %v1214, %v1102
        %v1216 = vand.u32 2147483647, %v1102
        %vm1217 = vcmp.lt.f32.partialorder %v1216, 0.0004427343
        %v1218 = vsel %vm1217, %v1215, %v1212
        %v1219 = vadd.f32 %v1104, 1.0
        %v1220 = vlog2.pop %v1219
        %v1221 = vmul.f32 %v1220, 0.6931472
        %v1222 = vmul.f32 -0.5, %v1104
        %v1223 = vadd.f32 %v1222, 1.0
        %v1224 = vmul.f32 %v1223, %v1104
        %v1225 = vand.u32 2147483647, %v1104
        %vm1226 = vcmp.lt.f32.partialorder %v1225, 0.0004427343
        %v1227 = vsel %vm1226, %v1224, %v1221
        %v1228 = vadd.f32 %v1106, 1.0
        %v1229 = vlog2.pop %v1228
        %v1230 = vmul.f32 %v1229, 0.6931472
        %v1231 = vmul.f32 -0.5, %v1106
        %v1232 = vadd.f32 %v1231, 1.0
        %v1233 = vmul.f32 %v1232, %v1106
        %v1234 = vand.u32 2147483647, %v1106
        %vm1235 = vcmp.lt.f32.partialorder %v1234, 0.0004427343
        %v1236 = vsel %vm1235, %v1233, %v1230
        %v1237 = vadd.f32 %v1108, 1.0
        %v1238 = vlog2.pop %v1237
        %v1239 = vmul.f32 %v1238, 0.6931472
        %v1240 = vmul.f32 -0.5, %v1108
        %v1241 = vadd.f32 %v1240, 1.0
        %v1242 = vmul.f32 %v1241, %v1108
        %v1243 = vand.u32 2147483647, %v1108
        %vm1244 = vcmp.lt.f32.partialorder %v1243, 0.0004427343
        %v1245 = vsel %vm1244, %v1242, %v1239
        %v1246 = vadd.f32 %v1110, 1.0
        %v1247 = vlog2.pop %v1246
        %v1248 = vmul.f32 %v1247, 0.6931472
        %v1249 = vmul.f32 -0.5, %v1110
        %v1250 = vadd.f32 %v1249, 1.0
        %v1251 = vmul.f32 %v1250, %v1110
        %v1252 = vand.u32 2147483647, %v1110
        %vm1253 = vcmp.lt.f32.partialorder %v1252, 0.0004427343
        %v1254 = vsel %vm1253, %v1251, %v1248
        %v1255 = vadd.f32 %v999, %v1119
        %v1256 = vadd.f32 %v1000, %v1128
        %v1257 = vadd.f32 %v1001, %v1137
        %v1258 = vadd.f32 %v1002, %v1146
        %v1259 = vadd.f32 %v1003, %v1155
        %v1260 = vadd.f32 %v1004, %v1164
        %v1261 = vadd.f32 %v1005, %v1173
        %v1262 = vadd.f32 %v1006, %v1182
        %v1263 = vadd.f32 %v1007, %v1191
        %v1264 = vadd.f32 %v1008, %v1200
        %v1265 = vadd.f32 %v1009, %v1209
        %v1266 = vadd.f32 %v1010, %v1218
        %v1267 = vadd.f32 %v1011, %v1227
        %v1268 = vadd.f32 %v1012, %v1236
        %v1269 = vadd.f32 %v1013, %v1245
        %v1270 = vadd.f32 %v1014, %v1254
        %v1271 = vsel %vm1015, %v1031, %v1255
        %v1272 = vsel %vm1016, %v1032, %v1256
        %v1273 = vsel %vm1017, %v1033, %v1257
        %v1274 = vsel %vm1018, %v1034, %v1258
        %v1275 = vsel %vm1019, %v1035, %v1259
        %v1276 = vsel %vm1020, %v1036, %v1260
        %v1277 = vsel %vm1021, %v1037, %v1261
        %v1278 = vsel %vm1022, %v1038, %v1262
        %v1279 = vsel %vm1023, %v1039, %v1263
        %v1280 = vsel %vm1024, %v1040, %v1264
        %v1281 = vsel %vm1025, %v1041, %v1265
        %v1282 = vsel %vm1026, %v1042, %v1266
        %v1283 = vsel %vm1027, %v1043, %v1267
        %v1284 = vsel %vm1028, %v1044, %v1268
        %v1285 = vsel %vm1029, %v1045, %v1269
        %v1286 = vsel %vm1030, %v1046, %v1270
        %v1287 = vld [vmem:[%s3] sm:$0xf]
        %v1288 = vld [vmem:[%s4] sm:$0xf]
        %1290 = vset.pattern.permute.xlu0 0
        %1291 = vperm.xlu0 %1290, %v1288
        %v1292 = vpop.permute.xlu0 %1291
        %vm1294 = vcmask 523264
        %v1296 = vsel %vm1294, %v1287, 0
        %1298 = vmatpush.msra.mxu0 0.0
        %1299 = vmatpush.msra.mxu0 0.0
        %1300 = vmatpush.msra.mxu0 0.0
        %1301 = vmatpush.msra.mxu0 0.0
        %1302 = vmatpush.msra.mxu0 0.0
        %1303 = vmatpush.msra.mxu0 0.0
        %1304 = vmatpush.msra.mxu0 0.0
        %1305 = vmatpush.msra.mxu0 0.0
        %1306 = vmatpush.msra.mxu0 %v1285
        %1307 = vmatpush.msra.mxu0 %v1283
        %1308 = vmatpush.msra.mxu0 %v1281
        %1309 = vmatpush.msra.mxu0 %v1279
        %1310 = vmatpush.msra.mxu0 %v1277
        %1311 = vmatpush.msra.mxu0 %v1275
        %1312 = vmatpush.msra.mxu0 %v1273
        %1313 = vmatpush.msra.mxu0 %v1271
        %1314 = vmatmul.f32.gmra.mxu0 %v1296
        %v1315 = vpop.f32.mrf.mxu0
        %v1316 = vadd.f32 %v1292, %v1315
        %1317 = vdwg.mxu0
        %1318 = vmatpush.msra.mxu0 0.0
        %1319 = vmatpush.msra.mxu0 0.0
        %1320 = vmatpush.msra.mxu0 0.0
        %1321 = vmatpush.msra.mxu0 0.0
        %1322 = vmatpush.msra.mxu0 0.0
        %1323 = vmatpush.msra.mxu0 0.0
        %1324 = vmatpush.msra.mxu0 0.0
        %1325 = vmatpush.msra.mxu0 0.0
        %1326 = vmatpush.msra.mxu0 %v1286
        %1327 = vmatpush.msra.mxu0 %v1284
        %1328 = vmatpush.msra.mxu0 %v1282
        %1329 = vmatpush.msra.mxu0 %v1280
        %1330 = vmatpush.msra.mxu0 %v1278
        %1331 = vmatpush.msra.mxu0 %v1276
        %1332 = vmatpush.msra.mxu0 %v1274
        %1333 = vmatpush.msra.mxu0 %v1272
        %1334 = vmatmul.f32.gmra.mxu0 %v1296
        %v1335 = vpop.f32.mrf.mxu0
        %v1336 = vadd.f32 %v1292, %v1335
        %1337 = vdwg.mxu0
        %v1338 = vxor.u32 %v1316, 2147483648
        %v1339 = vxor.u32 %v1336, 2147483648
        %v1340 = vmul.f32 %v1338, 1.442695
        %v1341 = vpow.pop %v1340
        %v1342 = vmul.f32 %v1339, 1.442695
        %v1343 = vpow.pop %v1342
        %v1344 = vadd.f32 %v1341, 1.0
        %v1345 = vadd.f32 %v1343, 1.0
        %v1346 = vrcp.pop %v1344
        %v1347 = vmul.f32 %v1344, %v1346
        %v1348 = vsub.f32 1.0, %v1347
        %v1349 = vmul.f32 %v1346, %v1348
        %v1350 = vadd.f32 %v1346, %v1349
        %vm1351 = vweird.f32 %v1344
        %vm1352 = vweird.f32 %v1346
        %vm1353 = vmor %vm1351, %vm1352
        %v1354 = vsel %vm1353, %v1346, %v1350
        %v1355 = vand.u32 2147483647, %v1344
        %vm1356 = vcmp.eq.f32.partialorder %v1355, 8.507059e+37
        %v1357 = vand.u32 %v1344, 2147483648
        %v1358 = vor.u32 1.1754944e-38, %v1357
        %v1359 = vsel %vm1356, %v1358, %v1354
        %v1360 = vmul.f32 1.0, %v1359
        %v1361 = vrcp.pop %v1345
        %v1362 = vmul.f32 %v1345, %v1361
        %v1363 = vsub.f32 1.0, %v1362
        %v1364 = vmul.f32 %v1361, %v1363
        %v1365 = vadd.f32 %v1361, %v1364
        %vm1366 = vweird.f32 %v1345
        %vm1367 = vweird.f32 %v1361
        %vm1368 = vmor %vm1366, %vm1367
        %v1369 = vsel %vm1368, %v1361, %v1365
        %v1370 = vand.u32 2147483647, %v1345
        %vm1371 = vcmp.eq.f32.partialorder %v1370, 8.507059e+37
        %v1372 = vand.u32 %v1345, 2147483648
        %v1373 = vor.u32 1.1754944e-38, %v1372
        %v1374 = vsel %vm1371, %v1373, %v1369
        %v1375 = vmul.f32 1.0, %v1374
        %v1376 = vmul.f32 %v1360, 1.002
        %v1377 = vmul.f32 %v1375, 1.002
        %v1378 = vsub.f32 %v1376, 0.001
        %v1379 = vsub.f32 %v1377, 0.001
        %v1380 = vlaneseq
        %v1381 = vshrl.u32 %v1380, 7
        %vm1382 = vcmp.eq.s32.totalorder %v1381, 0
        %v1383 = vsel %vm1382, %v1316, %v1378
        %v1384 = vsel %vm1382, %v1336, %v1379
        %v1387 = vrot.slane %v1384, 4
        %vm1388 = vcmask 1043456
        %v1389 = vsel %vm1388, %v1383, %v1387
        %1391 = vst [vmem:[%s242] sm:$0xff] %v1389
        %s1392 = sand.u32 %s153, 1
        %s1393 = scalar_lea.sflag [#allocation3], %s1392
        %s1394 = sand.u32 %s153, 1
        %s1395 = smul.addr %s1394, 8
        %s1396 = scalar_lea.vmem [#allocation2], %s1395
        // Predicated region
        $region41: #{tpu_custom_call.1} parent=39 // pred_check
          %p1397 = pneg %p163
        $region42: #{tpu_custom_call.1} parent=39 // pred_check_branch
          %1399 = sbr.rel (%p1397) target = $region44
        $region43: #{tpu_custom_call.1} parent=39 // pred_region
          %s1400 = smul.u32 2, %s24
          %1402 = vsyncadd %s1393, 0
          %s1403 = smul.addr %s23, 2
          %s1404 = sadd.s32 %s1400, %s1403
          %s1405 = smul.addr %s1404, 4
          %s1406 = scalar_lea.hbm %s5, %s1405
          %s1408 = sshll.u32 %s1396, 4
          %s1409 = int_to_ptr.vmem [resolvable:$true] %s1408
          %s1410 = sshll.u32 %s1406, 4
          %s1411 = int_to_ptr.hbm [resolvable:$true] %s1410
          %1413 = dma.vmem_to_hbm [thread:$0]  %s1409, 128, %s1411, %s1393
        $region44: #{tpu_custom_call.1} parent=39 // pred_fallthru
          _
      $region40: #{tpu_custom_call.1} parent=5 // pred_fallthru
        _
      %p1414 = scmp.le.s32.totalorder 2, %s14
      // Predicated region
      $region45: #{tpu_custom_call.1} parent=5 // pred_check
        %p1415 = pneg %p1414
      $region46: #{tpu_custom_call.1} parent=5 // pred_check_branch
        %1417 = sbr.rel (%p1415) target = $region48
      $region47: #{tpu_custom_call.1} parent=5 // pred_region
        %s1418 = ssub.s32 %s14, 2
        // Predicated region
        $region49: #{tpu_custom_call.1} parent=47 // pred_check
          %p1419 = pneg %p169
        $region50: #{tpu_custom_call.1} parent=47 // pred_check_branch
          %1421 = sbr.rel (%p1419) target = $region52
        $region51: #{tpu_custom_call.1} parent=47 // pred_region
          %s1422 = sand.u32 %s154, 1
          %s1423 = scalar_lea.sflag [#allocation3], %s1422
          %s1424 = sand.u32 %s154, 1
          %s1425 = smul.addr %s1424, 8
          %s1426 = scalar_lea.vmem [#allocation2], %s1425
          %1428 = dma.done %s1423, 128
        $region52: #{tpu_custom_call.1} parent=47 // pred_fallthru
          _
      $region48: #{tpu_custom_call.1} parent=5 // pred_fallthru
        _
    $region6: #{tpu_custom_call.1} parent=1 // loop_footer
      %s18 = sadd.s32 1, %s14
    $region7: #{tpu_custom_call.1} parent=1 // loop_footer_branch
      %13 = sbr.rel target = $region3
    $region8: #{tpu_custom_call.1} parent=1 // loop_exit
      _
    %1429 = vsyncpa [#allocation3], 1
    %s1430 = scalar_lea.sflag [#allocation3], 1
    %1431 = vsyncpa %s1430, 1

</llo_original>
